<compile_context>
chip_gen: v7x
topology: tpu7x:2x2x1
jax: 0.10.0
libtpu: 0.0.40
codegen_flags: <defaults>
</compile_context>

<pallas_src>
import functools

import numpy as np
import jax
import jax.numpy as jnp
from jax.experimental import pallas as pl
from jax.experimental.pallas import tpu as pltpu

_EPS = 1e-8          # torch.cosine_similarity default eps
_LANE = 128          # TPU lane width
_DEFAULT_TILE = 512


def _round_up(x: int, m: int) -> int:
    return ((x + m - 1) // m) * m


def _choose_tile(m: int, max_tile: int):
    """Adaptive tile: nb = cdiv(m, max_tile), T = round_up(cdiv(m, nb), 128)."""
    nb = max(1, -(-m // max_tile))
    t = _round_up(-(-m // nb), _LANE)
    return t, nb * t, nb


def _row_normalize(a):
    a = a.astype(jnp.float32)
    n = jnp.sqrt(jnp.sum(a * a, axis=1, keepdims=True))
    # TODO(synk): torch clamps the *product* of norms at eps; the per-row clamp
    # here differs only for degenerate (near-zero) pooled regions.
    return a / jnp.maximum(n, _EPS)


# -----------------------------------------------------------------------------
# MSE path: accumulate G = Z^T Z over M tiles, finalize with the sign-weighted
# Frobenius sum.  Z = [xn | yn] zero-padded to (Mp, Cp); padded rows/cols
# contribute exactly zero.
# -----------------------------------------------------------------------------
def _mse_gram_kernel(zt_ref, z_ref, out_ref, g_ref, *, c: int, inv_m2: float):
    t = pl.program_id(0)

    @pl.when(t == 0)
    def _init():
        g_ref[...] = jnp.zeros_like(g_ref)

    g_ref[...] += jnp.dot(zt_ref[...], z_ref[...],
                          preferred_element_type=jnp.float32)

    @pl.when(t == pl.num_programs(0) - 1)
    def _finalize():
        g = g_ref[...]
        cp = g.shape[0]
        row = jax.lax.broadcasted_iota(jnp.int32, (cp, cp), 0)
        col = jax.lax.broadcasted_iota(jnp.int32, (cp, cp), 1)
        # +1 inside the xx / yy blocks, -1 on the xy / yx blocks (padding is 0).
        s = jnp.where((row < c) == (col < c), 1.0, -1.0)
        out_ref[...] = (jnp.sum(s * g * g, keepdims=True) * inv_m2
                        ).astype(out_ref.dtype)


def _mse_gram_trace_loss(p1c, p2c, max_tile: int = _DEFAULT_TILE):
    M, C = p1c.shape
    Cp = _round_up(2 * C, _LANE)
    T, Mp, nb = _choose_tile(M, max_tile)

    xn = _row_normalize(p1c)
    yn = _row_normalize(p2c)
    z = jnp.pad(jnp.concatenate([xn, yn], axis=1),
                ((0, Mp - M), (0, Cp - 2 * C)))          # (Mp, Cp)
    zt = z.T                                             # (Cp, Mp)

    kernel = functools.partial(_mse_gram_kernel, c=C, inv_m2=1.0 / float(M * M))

    out = pl.pallas_call(
        kernel,
        out_shape=jax.ShapeDtypeStruct((1, 1), jnp.float32),
        grid_spec=pltpu.PrefetchScalarGridSpec(
            num_scalar_prefetch=0,
            grid=(nb,),
            in_specs=[pl.BlockSpec((Cp, T), lambda t: (0, t)),
                      pl.BlockSpec((T, Cp), lambda t: (t, 0))],
            out_specs=pl.BlockSpec((1, 1), lambda t: (0, 0)),
            scratch_shapes=[pltpu.VMEM((Cp, Cp), jnp.float32)],
        ),
        compiler_params=pltpu.CompilerParams(
            dimension_semantics=("arbitrary",)),
    )(zt, z)
    return out[0, 0]


# -----------------------------------------------------------------------------
# L1 path: upper-triangular sweep of T x T blocks of d = cos(X) - cos(Y).
# With the [x|y] / [x|-y] feature packing, each block is one matmul.
# The column operand is stacked per block and stays VMEM-resident all grid.
# -----------------------------------------------------------------------------
def _l1_gram_diff_kernel(bi_ref, bj_ref, x_ref, yt_ref, out_ref):
    t = pl.program_id(0)
    ycol = yt_ref[bj_ref[t]]                              # (Cp, T), VMEM-resident
    d = jnp.dot(x_ref[...], ycol, preferred_element_type=jnp.float32)
    tile_sum = jnp.sum(jnp.abs(d))
    # Off-diagonal blocks also stand in for their symmetric mirror block.
    w = jnp.where(bi_ref[t] == bj_ref[t], 1.0, 2.0)
    r = jax.lax.broadcasted_iota(jnp.int32, (8, 128), 0)
    c = jax.lax.broadcasted_iota(jnp.int32, (8, 128), 1)
    out_ref[...] = jnp.where((r == 0) & (c == 0),
                             w * tile_sum, 0.0).astype(out_ref.dtype)


def _l1_gram_diff_loss(p1c, p2c, max_tile: int = _DEFAULT_TILE):
    M, C = p1c.shape
    Cp = _round_up(2 * C, _LANE)
    T, Mp, nb = _choose_tile(M, max_tile)

    xn = _row_normalize(p1c)
    yn = _row_normalize(p2c)
    x = jnp.pad(jnp.concatenate([xn, yn], axis=1),
                ((0, Mp - M), (0, Cp - 2 * C)))           # (Mp, Cp)
    y_neg = jnp.pad(jnp.concatenate([xn, -yn], axis=1),
                    ((0, Mp - M), (0, Cp - 2 * C)))       # (Mp, Cp)
    # Stack the transposed column blocks along a leading axis: (nb, Cp, T).
    yt_blocks = y_neg.reshape(nb, T, Cp).transpose(0, 2, 1)

    # Upper-triangular block schedule (j >= i).
    bi_host, bj_host = [], []
    for i in range(nb):
        for j in range(i, nb):
            bi_host.append(i)
            bj_host.append(j)
    nt = len(bi_host)
    bi = jnp.asarray(bi_host, dtype=jnp.int32)
    bj = jnp.asarray(bj_host, dtype=jnp.int32)

    out = pl.pallas_call(
        _l1_gram_diff_kernel,
        out_shape=jax.ShapeDtypeStruct((nt * 8, 128), jnp.float32),
        grid_spec=pltpu.PrefetchScalarGridSpec(
            num_scalar_prefetch=2,
            grid=(nt,),
            in_specs=[
                # Row tile, streamed (consecutive steps reuse the same block).
                pl.BlockSpec((T, Cp), lambda t, bi_r, bj_r: (bi_r[t], 0)),
                # Whole transposed operand, VMEM-resident for the entire grid.
                pl.BlockSpec((nb, Cp, T), lambda t, bi_r, bj_r: (0, 0, 0)),
            ],
            out_specs=pl.BlockSpec((8, 128), lambda t, bi_r, bj_r: (t, 0)),
        ),
        compiler_params=pltpu.CompilerParams(
            dimension_semantics=("parallel",)),
    )(bi, bj, x, yt_blocks)

    return jnp.sum(out) * (1.0 / float(M * M))


# -----------------------------------------------------------------------------
# Glue: AdaptiveAvgPool3d (exact PyTorch bins) fused into one matmul per scale.
# -----------------------------------------------------------------------------
def _adaptive_pool_matrix(in_size: int, out_size: int) -> np.ndarray:
    """W[i, j] = 1/len(bin_i) for j in bin_i, matching AdaptiveAvgPool bins."""
    w = np.zeros((out_size, in_size), dtype=np.float32)
    for i in range(out_size):
        start = (i * in_size) // out_size
        end = -((-(i + 1) * in_size) // out_size)   # ceil((i+1)*in/out)
        w[i, start:end] = 1.0 / float(end - start)
    return w


def _pool_and_flatten(p, s: int):
    """AdaptiveAvgPool3d -> (s,s,s), then view/transpose/flatten -> (N*s^3, C)."""
    N, C, D, H, W = p.shape
    w_pool = np.kron(_adaptive_pool_matrix(D, s),
                     np.kron(_adaptive_pool_matrix(H, s),
                             _adaptive_pool_matrix(W, s)))          # (s^3, DHW)
    w_pool = jnp.asarray(w_pool, dtype=jnp.float32)
    x = p.reshape(N, C, D * H * W)
    pooled = jnp.einsum("ncf,rf->nrc", x, w_pool)                   # (N, s^3, C)
    return pooled.reshape(N * s * s * s, C)


def region_loss_3d_multi(p1, p2, spatial_size: int, spatial_size2: int,
                         dis_f: str = "MSE", max_tile: int = _DEFAULT_TILE):
    """Forward pass of RegionLoss_3D_multi (pool='Avg')."""
    # TODO(synk): pool='Max' (AdaptiveMaxPool3d) branch not implemented.
    aa = _pool_and_flatten(p1, spatial_size)
    bb = _pool_and_flatten(p2, spatial_size)
    cc = _pool_and_flatten(p1, spatial_size2)
    dd = _pool_and_flatten(p2, spatial_size2)
    p1c = jnp.concatenate([aa, cc], axis=0)     # (M, C)
    p2c = jnp.concatenate([bb, dd], axis=0)     # (M, C)
    if dis_f == "MSE":
        return _mse_gram_trace_loss(p1c, p2c, max_tile=max_tile)
    return _l1_gram_diff_loss(p1c, p2c, max_tile=max_tile)


# -----------------------------------------------------------------------------
# Pure-JAX reference (mirrors the torch module, independent pooling path).
# -----------------------------------------------------------------------------
def _reference(p1, p2, s1, s2, dis_f="MSE"):
    def pool(x, s):
        _, _, D, H, W = x.shape
        wd = jnp.asarray(_adaptive_pool_matrix(D, s))
        wh = jnp.asarray(_adaptive_pool_matrix(H, s))
        ww = jnp.asarray(_adaptive_pool_matrix(W, s))
        y = jnp.einsum("ncdhw,ad->ncahw", x, wd)
        y = jnp.einsum("ncahw,bh->ncabw", y, wh)
        y = jnp.einsum("ncabw,ew->ncabe", y, ww)
        n, c = y.shape[:2]
        return y.reshape(n, c, -1).transpose(0, 2, 1).reshape(-1, c)

    aa, bb = pool(p1, s1), pool(p2, s1)
    cc, dd = pool(p1, s2), pool(p2, s2)
    p1c = jnp.concatenate([aa, cc], axis=0)
    p2c = jnp.concatenate([bb, dd], axis=0)

    def cos_mat(x):
        g = x @ x.T
        w = jnp.sum(x * x, axis=1)
        den = jnp.sqrt(jnp.maximum(w[:, None] * w[None, :], _EPS * _EPS))
        return g / den

    d = cos_mat(p1c) - cos_mat(p2c)
    return jnp.mean(d * d) if dis_f == "MSE" else jnp.mean(jnp.abs(d))


if __name__ == "__main__":
    key = jax.random.PRNGKey(0)
    k1, k2, k3, k4 = jax.random.split(key, 4)

    # --- Small case consistent with the module: N=2, C=8, D=H=W=8 -----------
    N, C, D = 2, 8, 8
    s1, s2 = 2, 4          # M = N*(s1^3 + s2^3) = 144
    p1 = jax.random.normal(k1, (N, C, D, D, D), dtype=jnp.float32)
    p2 = jax.random.normal(k2, (N, C, D, D, D), dtype=jnp.float32)

    for dis in ("MSE", "L1"):
        got = jax.block_until_ready(region_loss_3d_multi(p1, p2, s1, s2, dis))
        ref = jax.block_until_ready(_reference(p1, p2, s1, s2, dis))
        assert jnp.allclose(got, ref, atol=1e-3, rtol=1e-3), \
            (dis, float(got), float(ref))

    # --- Larger case to exercise multi-block grids (triangular for L1) ------
    N2, C2, D2 = 2, 8, 12
    t1, t2 = 4, 6          # M = 2*(64 + 216) = 560 -> 3 row blocks at T=256
    q1 = jax.random.normal(k3, (N2, C2, D2, D2, D2), dtype=jnp.float32)
    q2 = jax.random.normal(k4, (N2, C2, D2, D2, D2), dtype=jnp.float32)

    for dis in ("MSE", "L1"):
        got = jax.block_until_ready(
            region_loss_3d_multi(q1, q2, t1, t2, dis, max_tile=256))
        ref = jax.block_until_ready(_reference(q1, q2, t1, t2, dis))
        assert jnp.allclose(got, ref, atol=1e-3, rtol=1e-3), \
            (dis, float(got), float(ref))

    print("KERNEL_OK")
</pallas_src>

<mosaic_0001>
module attributes {stable_mosaic.version = 11 : i64} {
  func.func @_mse_gram_kernel(%arg0: i32, %arg1: memref<128x256xf32, #tpu.memory_space<vmem>>, %arg2: memref<256x128xf32, #tpu.memory_space<vmem>>, %arg3: memref<1x1xf32, #tpu.memory_space<vmem>>, %arg4: memref<128x128xf32, #tpu.memory_space<vmem>>) attributes {dimension_semantics = [#tpu.dimension_semantics<arbitrary>], iteration_bounds = array<i64: 1>, scalar_prefetch = 0 : i64, scratch_operands = 1 : i64, tpu.core_type = #tpu.core_type<tc>, window_params = [{transform_indices = @transform_0, window_bounds = array<i64: 128, 256>}, {transform_indices = @transform_1, window_bounds = array<i64: 256, 128>}, {pipeline_mode = #tpu.pipeline_mode<synchronous>, transform_indices = @transform_2, window_bounds = array<i64: 1, 1>}]} {
    %c0_i32 = arith.constant 0 : i32
    %0 = arith.cmpi eq, %arg0, %c0_i32 : i32
    %1 = arith.extui %0 : i1 to i32
    %c0_i32_0 = arith.constant 0 : i32
    %2 = arith.cmpi ne, %1, %c0_i32_0 : i32
    scf.if %2 {
      %cst_10 = arith.constant 0.000000e+00 : f32
      %12 = vector.broadcast %cst_10 : f32 to vector<128x128xf32>
      %c0_11 = arith.constant 0 : index
      %c0_12 = arith.constant 0 : index
      %13 = vector.load %arg4[%c0_11, %c0_12] : memref<128x128xf32, #tpu.memory_space<vmem>>, vector<128x128xf32>
      tpu.vector_store %arg4[%c0_11, %c0_12], %12 {strides = array<i32>} : memref<128x128xf32, #tpu.memory_space<vmem>>, vector<128x128xf32>,
    } else {
    }
    %c0 = arith.constant 0 : index
    %c0_1 = arith.constant 0 : index
    %3 = vector.load %arg4[%c0, %c0_1] : memref<128x128xf32, #tpu.memory_space<vmem>>, vector<128x128xf32>
    %c0_2 = arith.constant 0 : index
    %c0_3 = arith.constant 0 : index
    %4 = vector.load %arg1[%c0_2, %c0_3] : memref<128x256xf32, #tpu.memory_space<vmem>>, vector<128x256xf32>
    %c0_4 = arith.constant 0 : index
    %c0_5 = arith.constant 0 : index
    %5 = vector.load %arg2[%c0_4, %c0_5] : memref<256x128xf32, #tpu.memory_space<vmem>>, vector<256x128xf32>
    %cst = arith.constant dense<0.000000e+00> : vector<128x128xf32>
    %6 = tpu.matmul %4, %5, %cst {dimension_numbers = #tpu.dot_dimension_numbers<[1], [0], [0], [1], [0, 0, 1, 1], [], []>} : vector<128x256xf32>, vector<256x128xf32>, vector<128x128xf32> -> vector<128x128xf32>
    %7 = arith.addf %3, %6 : vector<128x128xf32>
    %c0_6 = arith.constant 0 : index
    %c0_7 = arith.constant 0 : index
    %8 = vector.load %arg4[%c0_6, %c0_7] : memref<128x128xf32, #tpu.memory_space<vmem>>, vector<128x128xf32>
    tpu.vector_store %arg4[%c0_6, %c0_7], %7 {strides = array<i32>} : memref<128x128xf32, #tpu.memory_space<vmem>>, vector<128x128xf32>,
    %c0_i32_8 = arith.constant 0 : i32
    %9 = arith.cmpi eq, %arg0, %c0_i32_8 : i32
    %10 = arith.extui %9 : i1 to i32
    %c0_i32_9 = arith.constant 0 : i32
    %11 = arith.cmpi ne, %10, %c0_i32_9 : i32
    scf.if %11 {
      %c0_10 = arith.constant 0 : index
      %c0_11 = arith.constant 0 : index
      %12 = vector.load %arg4[%c0_10, %c0_11] : memref<128x128xf32, #tpu.memory_space<vmem>>, vector<128x128xf32>
      %13 = tpu.iota {dimensions = array<i32: 0>} : vector<128x128xi32>
      %14 = tpu.iota {dimensions = array<i32: 1>} : vector<128x128xi32>
      %c8_i32 = arith.constant 8 : i32
      %15 = vector.broadcast %c8_i32 : i32 to vector<128x128xi32>
      %16 = arith.cmpi slt, %13, %15 : vector<128x128xi32>
      %c8_i32_12 = arith.constant 8 : i32
      %17 = vector.broadcast %c8_i32_12 : i32 to vector<128x128xi32>
      %18 = arith.cmpi slt, %14, %17 : vector<128x128xi32>
      %19 = arith.xori %16, %18 : vector<128x128xi1>
      %cst_13 = arith.constant dense<true> : vector<128x128xi1>
      %20 = arith.xori %19, %cst_13 : vector<128x128xi1>
      %cst_14 = arith.constant 1.000000e+00 : f32
      %cst_15 = arith.constant -1.000000e+00 : f32
      %21 = vector.broadcast %cst_14 : f32 to vector<128x128xf32>
      %22 = vector.broadcast %cst_15 : f32 to vector<128x128xf32>
      %23 = arith.select %20, %21, %22 : vector<128x128xi1>, vector<128x128xf32>
      %24 = arith.mulf %23, %12 : vector<128x128xf32>
      %25 = arith.mulf %24, %12 : vector<128x128xf32>
      %26 = vector.shape_cast %25 : vector<128x128xf32> to vector<1x128x128xf32>
      %cst_16 = arith.constant dense<0.000000e+00> : vector<1xf32>
      %27 = vector.multi_reduction <add>, %26, %cst_16 [1, 2] : vector<1x128x128xf32> to vector<1xf32>
      %28 = vector.shape_cast %27 : vector<1xf32> to vector<1x1x1xf32>
      %29 = vector.extract %28[0, 0, 0] : f32 from vector<1x1x1xf32>
      %30 = vector.broadcast %29 : f32 to vector<1x1xf32>
      %cst_17 = arith.constant 4.8225309E-5 : f32
      %31 = vector.broadcast %cst_17 : f32 to vector<1x1xf32>
      %32 = arith.mulf %30, %31 : vector<1x1xf32>
      %c0_18 = arith.constant 0 : index
      %c0_19 = arith.constant 0 : index
      %33 = vector.load %arg3[%c0_18, %c0_19] : memref<1x1xf32, #tpu.memory_space<vmem>>, vector<1x1xf32>
      tpu.vector_store %arg3[%c0_18, %c0_19], %32 {strides = array<i32>} : memref<1x1xf32, #tpu.memory_space<vmem>>, vector<1x1xf32>,
    } else {
    }
    return
  }
  func.func @transform_0(%arg0: i32) -> (i32, i32) {
    %c0_i32 = arith.constant 0 : i32
    %c0_i32_0 = arith.constant 0 : i32
    return %c0_i32, %arg0 : i32, i32
  }
  func.func @transform_1(%arg0: i32) -> (i32, i32) {
    %c0_i32 = arith.constant 0 : i32
    %c0_i32_0 = arith.constant 0 : i32
    return %arg0, %c0_i32 : i32, i32
  }
  func.func @transform_2(%arg0: i32) -> (i32, i32) {
    %c0_i32 = arith.constant 0 : i32
    %c0_i32_0 = arith.constant 0 : i32
    %c0_i32_1 = arith.constant 0 : i32
    return %c0_i32, %c0_i32_0 : i32, i32
  }
}

</mosaic_0001>

<llo_original>
// kernel: tpu_custom_call.1
$region0: #{tpu_custom_call.1}
  #allocation0 [shape = 'u32[]', space=smem, size = 0x4, offset = 0x4, fixed_abs, tag = 'smem constant byte address 0x4 - core index']
  #allocation1 [shape = 'u32[144,128]{1,0:T(1,128)}', space=vmem, size = 0x12000, scoped, tag = 'internal scratch']
  #allocation2 [shape = 'f32[128,128]{1,0:T(8,128)}', space=vmem, size = 0x10000, scoped, tag = 'scratch operand']
  %s0 = inlined_call_operand.hbm [shape: f32[128,256], index: 0, kind: input, shape index: {}]
  %s1 = inlined_call_operand.hbm [shape: f32[256,128], index: 1, kind: input, shape index: {}]
  %s2 = inlined_call_operand.hbm [shape: f32[1,1], index: 2, kind: output, shape index: {}]
  %s3 = sld [smem:[#allocation0]]
  $region34: #{tpu_custom_call.1} parent=0
    _
  %s5 = ssub.s32 1, %s3
  %s6 = scalar_select 0, %s5, %s3
  $region1: #{tpu_custom_call.1} parent=0
    #allocation3 [shape = 'u8[131072]{0}', space=vmem, size = 0x20000, scoped, tag = 'input window, operand 0, single buffered']
    #allocation4 [shape = 's32[1]{0}', space=sflag, size = 0x4, scoped, tag = 'scoped memory for tpu_custom_call.1']
    #allocation5 [shape = 's32[1]{0}', space=sflag, size = 0x4, scoped, tag = 'scoped memory for tpu_custom_call.1']
    #allocation6 [shape = 'u8[131072]{0}', space=vmem, size = 0x20000, scoped, tag = 'input window, operand 1, single buffered']
    #allocation7 [shape = 's32[1]{0}', space=sflag, size = 0x4, scoped, tag = 'scoped memory for tpu_custom_call.1']
    #allocation8 [shape = 'u8[512]{0}', space=vmem, size = 0x400, scoped, tag = 'output window, operand 0, single buffered']
    %7 = vsyncpa [#allocation4], 0
    %8 = vsyncpa [#allocation7], 0
    %9 = vsyncpa [#allocation5], 0
    // Predicated region
    $region2: #{tpu_custom_call.1} parent=1 // pred_check
      _
    $region3: #{tpu_custom_call.1} parent=1 // pred_check_branch
      %11 = sbr.rel (0) target = $region5
    $region4: #{tpu_custom_call.1} parent=1 // pred_region
      %s13 = ssub.s32 4096, 4096
      %14 = vsyncadd [#allocation4], %s13
      %s15 = sshll.u32 [#allocation3], 4
      %s16 = int_to_ptr.vmem [resolvable:$true] %s15
      %21 = dma.hbm_to_vmem [thread:$0]  %s0, 4096, %s16, [#allocation4], 256, 256, 16
    $region5: #{tpu_custom_call.1} parent=1 // pred_fallthru
      _
    // Predicated region
    $region6: #{tpu_custom_call.1} parent=1 // pred_check
      _
    $region7: #{tpu_custom_call.1} parent=1 // pred_check_branch
      %23 = sbr.rel (0) target = $region9
    $region8: #{tpu_custom_call.1} parent=1 // pred_region
      %s25 = ssub.s32 4096, 4096
      %26 = vsyncadd [#allocation7], %s25
      %s27 = sshll.u32 [#allocation6], 4
      %s28 = int_to_ptr.vmem [resolvable:$true] %s27
      %33 = dma.hbm_to_vmem [thread:$0]  %s1, 4096, %s28, [#allocation7], 128, 128, 8
    $region9: #{tpu_custom_call.1} parent=1 // pred_fallthru
      _
    // Predicated region
    $region10: #{tpu_custom_call.1} parent=1 // pred_check
      _
    $region11: #{tpu_custom_call.1} parent=1 // pred_check_branch
      %35 = sbr.rel (0) target = $region13
    $region12: #{tpu_custom_call.1} parent=1 // pred_region
      %36 = dma.done [#allocation4], 4096
    $region13: #{tpu_custom_call.1} parent=1 // pred_fallthru
      _
    // Predicated region
    $region14: #{tpu_custom_call.1} parent=1 // pred_check
      _
    $region15: #{tpu_custom_call.1} parent=1 // pred_check_branch
      %38 = sbr.rel (0) target = $region17
    $region16: #{tpu_custom_call.1} parent=1 // pred_region
      %39 = dma.done [#allocation7], 4096
    $region17: #{tpu_custom_call.1} parent=1 // pred_fallthru
      _
    %p40 = scmp.eq.s32.totalorder 0, 0
    // Predicated region
    $region18: #{tpu_custom_call.1} parent=1 // pred_check
      %p41 = pneg %p40
    $region19: #{tpu_custom_call.1} parent=1 // pred_check_branch
      %43 = sbr.rel (%p41) target = $region21
    $region20: #{tpu_custom_call.1} parent=1 // pred_region
      %44 = vst [vmem:[#allocation2] sm:$0xff] 0.0
      %45 = vst [vmem:[#allocation2 + $0x8] sm:$0xff] 0.0
      %46 = vst [vmem:[#allocation2 + $0x10] sm:$0xff] 0.0
      %47 = vst [vmem:[#allocation2 + $0x18] sm:$0xff] 0.0
      %48 = vst [vmem:[#allocation2 + $0x20] sm:$0xff] 0.0
      %49 = vst [vmem:[#allocation2 + $0x28] sm:$0xff] 0.0
      %50 = vst [vmem:[#allocation2 + $0x30] sm:$0xff] 0.0
      %51 = vst [vmem:[#allocation2 + $0x38] sm:$0xff] 0.0
      %52 = vst [vmem:[#allocation2 + $0x40] sm:$0xff] 0.0
      %53 = vst [vmem:[#allocation2 + $0x48] sm:$0xff] 0.0
      %54 = vst [vmem:[#allocation2 + $0x50] sm:$0xff] 0.0
      %55 = vst [vmem:[#allocation2 + $0x58] sm:$0xff] 0.0
      %56 = vst [vmem:[#allocation2 + $0x60] sm:$0xff] 0.0
      %57 = vst [vmem:[#allocation2 + $0x68] sm:$0xff] 0.0
      %58 = vst [vmem:[#allocation2 + $0x70] sm:$0xff] 0.0
      %59 = vst [vmem:[#allocation2 + $0x78] sm:$0xff] 0.0
    $region21: #{tpu_custom_call.1} parent=1 // pred_fallthru
      _
    %v60 = vld [vmem:[#allocation2] sm:$0xff]
    %v61 = vld [vmem:[#allocation2 + $0x8] sm:$0xff]
    %v62 = vld [vmem:[#allocation2 + $0x10] sm:$0xff]
    %v63 = vld [vmem:[#allocation2 + $0x18] sm:$0xff]
    %v64 = vld [vmem:[#allocation2 + $0x20] sm:$0xff]
    %v65 = vld [vmem:[#allocation2 + $0x28] sm:$0xff]
    %v66 = vld [vmem:[#allocation2 + $0x30] sm:$0xff]
    %v67 = vld [vmem:[#allocation2 + $0x38] sm:$0xff]
    %v68 = vld [vmem:[#allocation2 + $0x40] sm:$0xff]
    %v69 = vld [vmem:[#allocation2 + $0x48] sm:$0xff]
    %v70 = vld [vmem:[#allocation2 + $0x50] sm:$0xff]
    %v71 = vld [vmem:[#allocation2 + $0x58] sm:$0xff]
    %v72 = vld [vmem:[#allocation2 + $0x60] sm:$0xff]
    %v73 = vld [vmem:[#allocation2 + $0x68] sm:$0xff]
    %v74 = vld [vmem:[#allocation2 + $0x70] sm:$0xff]
    %v75 = vld [vmem:[#allocation2 + $0x78] sm:$0xff]
    %v76 = vld [vmem:[#allocation3] sm:$0xff]
    %v77 = vld [vmem:[#allocation3 + $0x8] sm:$0xff]
    %v78 = vld [vmem:[#allocation3 + $0x10] sm:$0xff]
    %v79 = vld [vmem:[#allocation3 + $0x18] sm:$0xff]
    %v80 = vld [vmem:[#allocation3 + $0x20] sm:$0xff]
    %v81 = vld [vmem:[#allocation3 + $0x28] sm:$0xff]
    %v82 = vld [vmem:[#allocation3 + $0x30] sm:$0xff]
    %v83 = vld [vmem:[#allocation3 + $0x38] sm:$0xff]
    %v84 = vld [vmem:[#allocation3 + $0x40] sm:$0xff]
    %v85 = vld [vmem:[#allocation3 + $0x48] sm:$0xff]
    %v86 = vld [vmem:[#allocation3 + $0x50] sm:$0xff]
    %v87 = vld [vmem:[#allocation3 + $0x58] sm:$0xff]
    %v88 = vld [vmem:[#allocation3 + $0x60] sm:$0xff]
    %v89 = vld [vmem:[#allocation3 + $0x68] sm:$0xff]
    %v90 = vld [vmem:[#allocation3 + $0x70] sm:$0xff]
    %v91 = vld [vmem:[#allocation3 + $0x78] sm:$0xff]
    %v92 = vld [vmem:[#allocation3 + $0x80] sm:$0xff]
    %v93 = vld [vmem:[#allocation3 + $0x88] sm:$0xff]
    %v94 = vld [vmem:[#allocation3 + $0x90] sm:$0xff]
    %v95 = vld [vmem:[#allocation3 + $0x98] sm:$0xff]
    %v96 = vld [vmem:[#allocation3 + $0xa0] sm:$0xff]
    %v97 = vld [vmem:[#allocation3 + $0xa8] sm:$0xff]
    %v98 = vld [vmem:[#allocation3 + $0xb0] sm:$0xff]
    %v99 = vld [vmem:[#allocation3 + $0xb8] sm:$0xff]
    %v100 = vld [vmem:[#allocation3 + $0xc0] sm:$0xff]
    %v101 = vld [vmem:[#allocation3 + $0xc8] sm:$0xff]
    %v102 = vld [vmem:[#allocation3 + $0xd0] sm:$0xff]
    %v103 = vld [vmem:[#allocation3 + $0xd8] sm:$0xff]
    %v104 = vld [vmem:[#allocation3 + $0xe0] sm:$0xff]
    %v105 = vld [vmem:[#allocation3 + $0xe8] sm:$0xff]
    %v106 = vld [vmem:[#allocation3 + $0xf0] sm:$0xff]
    %v107 = vld [vmem:[#allocation3 + $0xf8] sm:$0xff]
    %v108 = vld [vmem:[#allocation6] sm:$0xff]
    %v109 = vld [vmem:[#allocation6 + $0x8] sm:$0xff]
    %v110 = vld [vmem:[#allocation6 + $0x10] sm:$0xff]
    %v111 = vld [vmem:[#allocation6 + $0x18] sm:$0xff]
    %v112 = vld [vmem:[#allocation6 + $0x20] sm:$0xff]
    %v113 = vld [vmem:[#allocation6 + $0x28] sm:$0xff]
    %v114 = vld [vmem:[#allocation6 + $0x30] sm:$0xff]
    %v115 = vld [vmem:[#allocation6 + $0x38] sm:$0xff]
    %v116 = vld [vmem:[#allocation6 + $0x40] sm:$0xff]
    %v117 = vld [vmem:[#allocation6 + $0x48] sm:$0xff]
    %v118 = vld [vmem:[#allocation6 + $0x50] sm:$0xff]
    %v119 = vld [vmem:[#allocation6 + $0x58] sm:$0xff]
    %v120 = vld [vmem:[#allocation6 + $0x60] sm:$0xff]
    %v121 = vld [vmem:[#allocation6 + $0x68] sm:$0xff]
    %v122 = vld [vmem:[#allocation6 + $0x70] sm:$0xff]
    %v123 = vld [vmem:[#allocation6 + $0x78] sm:$0xff]
    %v124 = vld [vmem:[#allocation6 + $0x80] sm:$0xff]
    %v125 = vld [vmem:[#allocation6 + $0x88] sm:$0xff]
    %v126 = vld [vmem:[#allocation6 + $0x90] sm:$0xff]
    %v127 = vld [vmem:[#allocation6 + $0x98] sm:$0xff]
    %v128 = vld [vmem:[#allocation6 + $0xa0] sm:$0xff]
    %v129 = vld [vmem:[#allocation6 + $0xa8] sm:$0xff]
    %v130 = vld [vmem:[#allocation6 + $0xb0] sm:$0xff]
    %v131 = vld [vmem:[#allocation6 + $0xb8] sm:$0xff]
    %v132 = vld [vmem:[#allocation6 + $0xc0] sm:$0xff]
    %v133 = vld [vmem:[#allocation6 + $0xc8] sm:$0xff]
    %v134 = vld [vmem:[#allocation6 + $0xd0] sm:$0xff]
    %v135 = vld [vmem:[#allocation6 + $0xd8] sm:$0xff]
    %v136 = vld [vmem:[#allocation6 + $0xe0] sm:$0xff]
    %v137 = vld [vmem:[#allocation6 + $0xe8] sm:$0xff]
    %v138 = vld [vmem:[#allocation6 + $0xf0] sm:$0xff]
    %v139 = vld [vmem:[#allocation6 + $0xf8] sm:$0xff]
    %140 = vmatprep.subr.mxu0 0.0
    %141 = vmatpush1.msra.mxu0 %v108
    %142 = vmatprep.subr.mxu0 0.0
    %143 = vmatpush1.msra.mxu0 %v109
    %144 = vmatprep.subr.mxu0 0.0
    %145 = vmatpush1.msra.mxu0 %v110
    %146 = vmatprep.subr.mxu0 0.0
    %147 = vmatpush1.msra.mxu0 %v111
    %148 = vmatprep.subr.mxu0 0.0
    %149 = vmatpush1.msra.mxu0 %v112
    %150 = vmatprep.subr.mxu0 0.0
    %151 = vmatpush1.msra.mxu0 %v113
    %152 = vmatprep.subr.mxu0 0.0
    %153 = vmatpush1.msra.mxu0 %v114
    %154 = vmatprep.subr.mxu0 0.0
    %155 = vmatpush1.msra.mxu0 %v115
    %156 = vmatprep.subr.mxu0 0.0
    %157 = vmatpush1.msra.mxu0 %v116
    %158 = vmatprep.subr.mxu0 0.0
    %159 = vmatpush1.msra.mxu0 %v117
    %160 = vmatprep.subr.mxu0 0.0
    %161 = vmatpush1.msra.mxu0 %v118
    %162 = vmatprep.subr.mxu0 0.0
    %163 = vmatpush1.msra.mxu0 %v119
    %164 = vmatprep.subr.mxu0 0.0
    %165 = vmatpush1.msra.mxu0 %v120
    %166 = vmatprep.subr.mxu0 0.0
    %167 = vmatpush1.msra.mxu0 %v121
    %168 = vmatprep.subr.mxu0 0.0
    %169 = vmatpush1.msra.mxu0 %v122
    %170 = vmatprep.subr.mxu0 0.0
    %171 = vmatpush1.msra.mxu0 %v123
    %172 = vmatprep.subr.mxu0 0.0
    %173 = vmatpush1.msra.mxu0 %v124
    %174 = vmatprep.subr.mxu0 0.0
    %175 = vmatpush1.msra.mxu0 %v125
    %176 = vmatprep.subr.mxu0 0.0
    %177 = vmatpush1.msra.mxu0 %v126
    %178 = vmatprep.subr.mxu0 0.0
    %179 = vmatpush1.msra.mxu0 %v127
    %180 = vmatprep.subr.mxu0 0.0
    %181 = vmatpush1.msra.mxu0 %v128
    %182 = vmatprep.subr.mxu0 0.0
    %183 = vmatpush1.msra.mxu0 %v129
    %184 = vmatprep.subr.mxu0 0.0
    %185 = vmatpush1.msra.mxu0 %v130
    %186 = vmatprep.subr.mxu0 0.0
    %187 = vmatpush1.msra.mxu0 %v131
    %188 = vmatprep.subr.mxu0 0.0
    %189 = vmatpush1.msra.mxu0 %v132
    %190 = vmatprep.subr.mxu0 0.0
    %191 = vmatpush1.msra.mxu0 %v133
    %192 = vmatprep.subr.mxu0 0.0
    %193 = vmatpush1.msra.mxu0 %v134
    %194 = vmatprep.subr.mxu0 0.0
    %195 = vmatpush1.msra.mxu0 %v135
    %196 = vmatprep.subr.mxu0 0.0
    %197 = vmatpush1.msra.mxu0 %v136
    %198 = vmatprep.subr.mxu0 0.0
    %199 = vmatpush1.msra.mxu0 %v137
    %200 = vmatprep.subr.mxu0 0.0
    %201 = vmatpush1.msra.mxu0 %v138
    %202 = vmatprep.subr.mxu0 0.0
    %203 = vmatpush1.msra.mxu0 %v139
    %204 = vmatprep.mubr.f32.mxu0 %v77
    %205 = vmatmul.mubr.f32.gmra.mrb[0].mxu0 %v76
    %v206 = vpop.f32.mrb[0].mxu0
    %v207 = vadd.f32 0.0, %v206
    %v208 = vpop.f32.mrb[0].mxu0
    %209 = vmatprep.mubr.f32.mxu0 %v79
    %210 = vmatmul.mubr.f32.gmra.mrb[0].mxu0 %v78
    %v211 = vpop.f32.mrb[0].mxu0
    %v212 = vadd.f32 0.0, %v211
    %v213 = vpop.f32.mrb[0].mxu0
    %214 = vmatprep.mubr.f32.mxu0 %v81
    %215 = vmatmul.mubr.f32.gmra.mrb[0].mxu0 %v80
    %v216 = vpop.f32.mrb[0].mxu0
    %v217 = vadd.f32 0.0, %v216
    %v218 = vpop.f32.mrb[0].mxu0
    %219 = vmatprep.mubr.f32.mxu0 %v83
    %220 = vmatmul.mubr.f32.gmra.mrb[0].mxu0 %v82
    %v221 = vpop.f32.mrb[0].mxu0
    %v222 = vadd.f32 0.0, %v221
    %v223 = vpop.f32.mrb[0].mxu0
    %224 = vmatprep.mubr.f32.mxu0 %v85
    %225 = vmatmul.mubr.f32.gmra.mrb[0].mxu0 %v84
    %v226 = vpop.f32.mrb[0].mxu0
    %v227 = vadd.f32 0.0, %v226
    %v228 = vpop.f32.mrb[0].mxu0
    %229 = vmatprep.mubr.f32.mxu0 %v87
    %230 = vmatmul.mubr.f32.gmra.mrb[0].mxu0 %v86
    %v231 = vpop.f32.mrb[0].mxu0
    %v232 = vadd.f32 0.0, %v231
    %v233 = vpop.f32.mrb[0].mxu0
    %234 = vmatprep.mubr.f32.mxu0 %v89
    %235 = vmatmul.mubr.f32.gmra.mrb[0].mxu0 %v88
    %v236 = vpop.f32.mrb[0].mxu0
    %v237 = vadd.f32 0.0, %v236
    %v238 = vpop.f32.mrb[0].mxu0
    %239 = vmatprep.mubr.f32.mxu0 %v91
    %240 = vmatmul.mubr.f32.gmra.mrb[0].mxu0 %v90
    %v241 = vpop.f32.mrb[0].mxu0
    %v242 = vadd.f32 0.0, %v241
    %v243 = vpop.f32.mrb[0].mxu0
    %244 = vmatprep.mubr.f32.mxu0 %v93
    %245 = vmatmul.mubr.f32.gmra.mrb[0].mxu0 %v92
    %v246 = vpop.f32.mrb[0].mxu0
    %v247 = vadd.f32 0.0, %v246
    %v248 = vpop.f32.mrb[0].mxu0
    %249 = vmatprep.mubr.f32.mxu0 %v95
    %250 = vmatmul.mubr.f32.gmra.mrb[0].mxu0 %v94
    %v251 = vpop.f32.mrb[0].mxu0
    %v252 = vadd.f32 0.0, %v251
    %v253 = vpop.f32.mrb[0].mxu0
    %254 = vmatprep.mubr.f32.mxu0 %v97
    %255 = vmatmul.mubr.f32.gmra.mrb[0].mxu0 %v96
    %v256 = vpop.f32.mrb[0].mxu0
    %v257 = vadd.f32 0.0, %v256
    %v258 = vpop.f32.mrb[0].mxu0
    %259 = vmatprep.mubr.f32.mxu0 %v99
    %260 = vmatmul.mubr.f32.gmra.mrb[0].mxu0 %v98
    %v261 = vpop.f32.mrb[0].mxu0
    %v262 = vadd.f32 0.0, %v261
    %v263 = vpop.f32.mrb[0].mxu0
    %264 = vmatprep.mubr.f32.mxu0 %v101
    %265 = vmatmul.mubr.f32.gmra.mrb[0].mxu0 %v100
    %v266 = vpop.f32.mrb[0].mxu0
    %v267 = vadd.f32 0.0, %v266
    %v268 = vpop.f32.mrb[0].mxu0
    %269 = vmatprep.mubr.f32.mxu0 %v103
    %270 = vmatmul.mubr.f32.gmra.mrb[0].mxu0 %v102
    %v271 = vpop.f32.mrb[0].mxu0
    %v272 = vadd.f32 0.0, %v271
    %v273 = vpop.f32.mrb[0].mxu0
    %274 = vmatprep.mubr.f32.mxu0 %v105
    %275 = vmatmul.mubr.f32.gmra.mrb[0].mxu0 %v104
    %v276 = vpop.f32.mrb[0].mxu0
    %v277 = vadd.f32 0.0, %v276
    %v278 = vpop.f32.mrb[0].mxu0
    %279 = vmatprep.mubr.f32.mxu0 %v107
    %280 = vmatmul.mubr.f32.gmra.mrb[0].mxu0 %v106
    %v281 = vpop.f32.mrb[0].mxu0
    %v282 = vadd.f32 0.0, %v281
    %v283 = vpop.f32.mrb[0].mxu0
    %284 = vdwg.mxu0
    %v285 = vadd.f32 %v60, %v207
    %v286 = vadd.f32 %v61, %v212
    %v287 = vadd.f32 %v62, %v217
    %v288 = vadd.f32 %v63, %v222
    %v289 = vadd.f32 %v64, %v227
    %v290 = vadd.f32 %v65, %v232
    %v291 = vadd.f32 %v66, %v237
    %v292 = vadd.f32 %v67, %v242
    %v293 = vadd.f32 %v68, %v247
    %v294 = vadd.f32 %v69, %v252
    %v295 = vadd.f32 %v70, %v257
    %v296 = vadd.f32 %v71, %v262
    %v297 = vadd.f32 %v72, %v267
    %v298 = vadd.f32 %v73, %v272
    %v299 = vadd.f32 %v74, %v277
    %v300 = vadd.f32 %v75, %v282
    %301 = vst [vmem:[#allocation2] sm:$0xff] %v285
    %302 = vst [vmem:[#allocation2 + $0x8] sm:$0xff] %v286
    %303 = vst [vmem:[#allocation2 + $0x10] sm:$0xff] %v287
    %304 = vst [vmem:[#allocation2 + $0x18] sm:$0xff] %v288
    %305 = vst [vmem:[#allocation2 + $0x20] sm:$0xff] %v289
    %306 = vst [vmem:[#allocation2 + $0x28] sm:$0xff] %v290
    %307 = vst [vmem:[#allocation2 + $0x30] sm:$0xff] %v291
    %308 = vst [vmem:[#allocation2 + $0x38] sm:$0xff] %v292
    %309 = vst [vmem:[#allocation2 + $0x40] sm:$0xff] %v293
    %310 = vst [vmem:[#allocation2 + $0x48] sm:$0xff] %v294
    %311 = vst [vmem:[#allocation2 + $0x50] sm:$0xff] %v295
    %312 = vst [vmem:[#allocation2 + $0x58] sm:$0xff] %v296
    %313 = vst [vmem:[#allocation2 + $0x60] sm:$0xff] %v297
    %314 = vst [vmem:[#allocation2 + $0x68] sm:$0xff] %v298
    %315 = vst [vmem:[#allocation2 + $0x70] sm:$0xff] %v299
    %316 = vst [vmem:[#allocation2 + $0x78] sm:$0xff] %v300
    // Predicated region
    $region22: #{tpu_custom_call.1} parent=1 // pred_check
      %p317 = pneg %p40
    $region23: #{tpu_custom_call.1} parent=1 // pred_check_branch
      %319 = sbr.rel (%p317) target = $region25
    $region24: #{tpu_custom_call.1} parent=1 // pred_region
      %v320 = vld [vmem:[#allocation2] sm:$0xff]
      %v321 = vld [vmem:[#allocation2 + $0x8] sm:$0xff]
      %v322 = vld [vmem:[#allocation2 + $0x10] sm:$0xff]
      %v323 = vld [vmem:[#allocation2 + $0x18] sm:$0xff]
      %v324 = vld [vmem:[#allocation2 + $0x20] sm:$0xff]
      %v325 = vld [vmem:[#allocation2 + $0x28] sm:$0xff]
      %v326 = vld [vmem:[#allocation2 + $0x30] sm:$0xff]
      %v327 = vld [vmem:[#allocation2 + $0x38] sm:$0xff]
      %v328 = vld [vmem:[#allocation2 + $0x40] sm:$0xff]
      %v329 = vld [vmem:[#allocation2 + $0x48] sm:$0xff]
      %v330 = vld [vmem:[#allocation2 + $0x50] sm:$0xff]
      %v331 = vld [vmem:[#allocation2 + $0x58] sm:$0xff]
      %v332 = vld [vmem:[#allocation2 + $0x60] sm:$0xff]
      %v333 = vld [vmem:[#allocation2 + $0x68] sm:$0xff]
      %v334 = vld [vmem:[#allocation2 + $0x70] sm:$0xff]
      %v335 = vld [vmem:[#allocation2 + $0x78] sm:$0xff]
      %v336 = vlaneseq
      %v337 = vshrl.u32 %v336, 7
      %v338 = vadd.s32 %v337, 8
      %v339 = vadd.s32 %v337, 16
      %v340 = vadd.s32 %v337, 24
      %v341 = vadd.s32 %v337, 32
      %v342 = vadd.s32 %v337, 40
      %v343 = vadd.s32 %v337, 48
      %v344 = vadd.s32 %v337, 56
      %v345 = vadd.s32 %v337, 64
      %v346 = vadd.s32 %v337, 72
      %v347 = vadd.s32 %v337, 80
      %v348 = vadd.s32 %v337, 88
      %v349 = vadd.s32 %v337, 96
      %v350 = vadd.s32 %v337, 104
      %v351 = vadd.s32 %v337, 112
      %v352 = vadd.s32 %v337, 120
      %v353 = vlaneseq
      %v354 = vand.u32 %v353, 127
      %vm355 = vcmp.lt.s32.totalorder %v337, 8
      %vm356 = vcmp.lt.s32.totalorder %v338, 8
      %vm357 = vcmp.lt.s32.totalorder %v339, 8
      %vm358 = vcmp.lt.s32.totalorder %v340, 8
      %vm359 = vcmp.lt.s32.totalorder %v341, 8
      %vm360 = vcmp.lt.s32.totalorder %v342, 8
      %vm361 = vcmp.lt.s32.totalorder %v343, 8
      %vm362 = vcmp.lt.s32.totalorder %v344, 8
      %vm363 = vcmp.lt.s32.totalorder %v345, 8
      %vm364 = vcmp.lt.s32.totalorder %v346, 8
      %vm365 = vcmp.lt.s32.totalorder %v347, 8
      %vm366 = vcmp.lt.s32.totalorder %v348, 8
      %vm367 = vcmp.lt.s32.totalorder %v349, 8
      %vm368 = vcmp.lt.s32.totalorder %v350, 8
      %vm369 = vcmp.lt.s32.totalorder %v351, 8
      %vm370 = vcmp.lt.s32.totalorder %v352, 8
      %vm371 = vcmp.lt.s32.totalorder %v354, 8
      %vm372 = vmxor %vm355, %vm371
      %vm373 = vmxor %vm356, %vm371
      %vm374 = vmxor %vm357, %vm371
      %vm375 = vmxor %vm358, %vm371
      %vm376 = vmxor %vm359, %vm371
      %vm377 = vmxor %vm360, %vm371
      %vm378 = vmxor %vm361, %vm371
      %vm379 = vmxor %vm362, %vm371
      %vm380 = vmxor %vm363, %vm371
      %vm381 = vmxor %vm364, %vm371
      %vm382 = vmxor %vm365, %vm371
      %vm383 = vmxor %vm366, %vm371
      %vm384 = vmxor %vm367, %vm371
      %vm385 = vmxor %vm368, %vm371
      %vm386 = vmxor %vm369, %vm371
      %vm387 = vmxor %vm370, %vm371
      %vm388 = vmxor %vm372, 1
      %vm389 = vmxor %vm373, 1
      %vm390 = vmxor %vm374, 1
      %vm391 = vmxor %vm375, 1
      %vm392 = vmxor %vm376, 1
      %vm393 = vmxor %vm377, 1
      %vm394 = vmxor %vm378, 1
      %vm395 = vmxor %vm379, 1
      %vm396 = vmxor %vm380, 1
      %vm397 = vmxor %vm381, 1
      %vm398 = vmxor %vm382, 1
      %vm399 = vmxor %vm383, 1
      %vm400 = vmxor %vm384, 1
      %vm401 = vmxor %vm385, 1
      %vm402 = vmxor %vm386, 1
      %vm403 = vmxor %vm387, 1
      %v404 = vsel %vm388, 1.0, -1.0
      %v405 = vsel %vm389, 1.0, -1.0
      %v406 = vsel %vm390, 1.0, -1.0
      %v407 = vsel %vm391, 1.0, -1.0
      %v408 = vsel %vm392, 1.0, -1.0
      %v409 = vsel %vm393, 1.0, -1.0
      %v410 = vsel %vm394, 1.0, -1.0
      %v411 = vsel %vm395, 1.0, -1.0
      %v412 = vsel %vm396, 1.0, -1.0
      %v413 = vsel %vm397, 1.0, -1.0
      %v414 = vsel %vm398, 1.0, -1.0
      %v415 = vsel %vm399, 1.0, -1.0
      %v416 = vsel %vm400, 1.0, -1.0
      %v417 = vsel %vm401, 1.0, -1.0
      %v418 = vsel %vm402, 1.0, -1.0
      %v419 = vsel %vm403, 1.0, -1.0
      %v420 = vmul.f32 %v404, %v320
      %v421 = vmul.f32 %v405, %v321
      %v422 = vmul.f32 %v406, %v322
      %v423 = vmul.f32 %v407, %v323
      %v424 = vmul.f32 %v408, %v324
      %v425 = vmul.f32 %v409, %v325
      %v426 = vmul.f32 %v410, %v326
      %v427 = vmul.f32 %v411, %v327
      %v428 = vmul.f32 %v412, %v328
      %v429 = vmul.f32 %v413, %v329
      %v430 = vmul.f32 %v414, %v330
      %v431 = vmul.f32 %v415, %v331
      %v432 = vmul.f32 %v416, %v332
      %v433 = vmul.f32 %v417, %v333
      %v434 = vmul.f32 %v418, %v334
      %v435 = vmul.f32 %v419, %v335
      %v436 = vmul.f32 %v420, %v320
      %v437 = vmul.f32 %v421, %v321
      %v438 = vmul.f32 %v422, %v322
      %v439 = vmul.f32 %v423, %v323
      %v440 = vmul.f32 %v424, %v324
      %v441 = vmul.f32 %v425, %v325
      %v442 = vmul.f32 %v426, %v326
      %v443 = vmul.f32 %v427, %v327
      %v444 = vmul.f32 %v428, %v328
      %v445 = vmul.f32 %v429, %v329
      %v446 = vmul.f32 %v430, %v330
      %v447 = vmul.f32 %v431, %v331
      %v448 = vmul.f32 %v432, %v332
      %v449 = vmul.f32 %v433, %v333
      %v450 = vmul.f32 %v434, %v334
      %v451 = vmul.f32 %v435, %v335
      %v452 = vadd.f32 %v436, %v437
      %v453 = vadd.f32 %v452, %v438
      %v454 = vadd.f32 %v453, %v439
      %v455 = vadd.f32 %v454, %v440
      %v456 = vadd.f32 %v455, %v441
      %v457 = vadd.f32 %v456, %v442
      %v458 = vadd.f32 %v457, %v443
      %v459 = vadd.f32 %v458, %v444
      %v460 = vadd.f32 %v459, %v445
      %v461 = vadd.f32 %v460, %v446
      %v462 = vadd.f32 %v461, %v447
      %v463 = vadd.f32 %v462, %v448
      %v464 = vadd.f32 %v463, %v449
      %v465 = vadd.f32 %v464, %v450
      %v466 = vadd.f32 %v465, %v451
      %467 = vadd.xlane.f32.xlu0 %v466
      %v468 = vpop.xlane.xlu0 %467
      %v469 = vrot.slane %v468, 4
      %v470 = vadd.f32 %v468, %v469
      %v471 = vrot.slane %v470, 2
      %v472 = vadd.f32 %v470, %v471
      %v473 = vrot.slane %v472, 1
      %v474 = vadd.f32 %v472, %v473
      %s475 = vtos %v474
      %v476 = vstv %s475
      %v477 = vmul.f32 %v476, 4.822531e-05
      %vm478 = vcmask 0
      %479 = vst.msk [vmem:[#allocation8] sm:$0x1] %vm478, %v477
    $region25: #{tpu_custom_call.1} parent=1 // pred_fallthru
      _
    // Predicated region
    $region26: #{tpu_custom_call.1} parent=1 // pred_check
      _
    $region27: #{tpu_custom_call.1} parent=1 // pred_check_branch
      %481 = sbr.rel (0) target = $region29
    $region28: #{tpu_custom_call.1} parent=1 // pred_region
      %s483 = ssub.s32 16, 16
      %484 = vsyncadd [#allocation5], %s483
      %s486 = sshll.u32 [#allocation8], 4
      %s487 = int_to_ptr.vmem [resolvable:$true] %s486
      %489 = dma.vmem_to_hbm [thread:$0]  %s487, 16, %s2, [#allocation5]
    $region29: #{tpu_custom_call.1} parent=1 // pred_fallthru
      _
    // Predicated region
    $region30: #{tpu_custom_call.1} parent=1 // pred_check
      _
    $region31: #{tpu_custom_call.1} parent=1 // pred_check_branch
      %491 = sbr.rel (0) target = $region33
    $region32: #{tpu_custom_call.1} parent=1 // pred_region
      %492 = dma.done [#allocation5], 16
    $region33: #{tpu_custom_call.1} parent=1 // pred_fallthru
      _
    %493 = vsyncpa [#allocation4], 1
    %494 = vsyncpa [#allocation7], 1
    %495 = vsyncpa [#allocation5], 1

</llo_original>
